<compile_context>
chip_gen: v7x
topology: tpu7x:2x2x1
jax: 0.10.0
libtpu: 0.0.40
codegen_flags: <defaults>
</compile_context>

<pallas_src>
import functools

import jax
import jax.numpy as jnp
from jax import lax
from jax.experimental import pallas as pl
from jax.experimental.pallas import tpu as pltpu


def _conv_in_relu_kernel(p_ref, w_ref, o_ref, *, eps):
    # p_ref: (1, K, P)   im2col patches for this image (lane axis = spatial P)
    # w_ref: (Cout, K)   flattened conv weight, (C, kh, kw) feature order
    # o_ref: (1, Cout, P)
    patches = p_ref[0]                                   # (K, P)
    w = w_ref[...]                                       # (Cout, K)

    # Convolution as a single MXU matmul; f32 accumulation regardless of
    # operand dtype (bf16 operands by default, see wrapper).
    y = jnp.dot(w, patches, preferred_element_type=jnp.float32)   # (Cout, P) f32

    # InstanceNorm2d (affine=False, biased variance, eps=1e-5), all stats in f32.
    # Single pass over y: var = E[y^2] - E[y]^2.
    p = y.shape[1]
    inv_p = 1.0 / p
    mean = jnp.sum(y, axis=1, keepdims=True) * inv_p               # (Cout, 1)
    mean_sq = jnp.sum(y * y, axis=1, keepdims=True) * inv_p        # (Cout, 1)
    var = mean_sq - mean * mean
    y = (y - mean) * lax.rsqrt(var + eps)                          # rsqrt -> EUP

    # ReLU, lane-dense store (last dim = P, multiple of 128 here).
    o_ref[0] = jnp.maximum(y, 0.0).astype(o_ref.dtype)


def _im2col_kcp(x, kh, kw, sh, sw, ph, pw):
    """(N, C, H, W) -> (N, C*kh*kw, OH*OW).

    K is ordered (C, kh, kw), matching weight.reshape(Cout, C*kh*kw); the
    spatial axis is last so the kernel input is already lane-dense and no
    XLA transpose of the kh*kw-inflated tensor is needed.
    """
    x = jnp.pad(x, ((0, 0), (0, 0), (ph, ph), (pw, pw)))
    n, c, h, w = x.shape
    oh = (h - kh) // sh + 1
    ow = (w - kw) // sw + 1
    cols = [x[:, :, i:i + sh * oh:sh, j:j + sw * ow:sw]            # (N, C, oh, ow)
            for i in range(kh) for j in range(kw)]
    cols = jnp.stack(cols, axis=2)                                 # (N, C, kh*kw, oh, ow)
    return cols.reshape(n, c * kh * kw, oh * ow), oh, ow


def my_conv2d(x, weight, bias=None, stride=(1, 1), padding=0, *,
              eps=1e-5, compute_dtype=jnp.bfloat16):
    """Conv2d -> InstanceNorm2d(affine=False) -> ReLU.

    x: (N, Cin, H, W) NCHW. weight: (Cout, Cin, KH, KW). bias: (Cout,) or None.

    `bias` is accepted for API parity with nn.Conv2d but is mathematically a
    no-op under the following InstanceNorm (mean subtraction cancels a
    per-channel bias; variance is unchanged), so it is not fed to the kernel.
    """
    del bias
    if isinstance(stride, int):
        stride = (stride, stride)
    if isinstance(padding, int):
        padding = (padding, padding)

    cout, cin, kh, kw = weight.shape
    n = x.shape[0]

    patches, oh, ow = _im2col_kcp(x, kh, kw, stride[0], stride[1],
                                  padding[0], padding[1])
    K = cin * kh * kw
    P = oh * ow

    # bf16 MXU operands (halves DMA/VMEM footprint of the patches and doubles
    # MXU throughput on v6e/v7x); accumulation + norm stay f32 in the kernel.
    patches = patches.astype(compute_dtype)
    w_mat = weight.reshape(cout, K).astype(compute_dtype)          # (Cout, K)

    # NOTE: for large images (P too big for VMEM, esp. v7x's 64 MiB) this
    # whole-image block would need a P-tiled two-pass (stats, then normalize)
    # scheme; at these shapes the (K, P) slab is a few KB and one block per
    # image is the overhead-minimal choice.
    out = pl.pallas_call(
        functools.partial(_conv_in_relu_kernel, eps=eps),
        out_shape=jax.ShapeDtypeStruct((n, cout, P), x.dtype),
        grid_spec=pltpu.PrefetchScalarGridSpec(
            num_scalar_prefetch=0,
            grid=(n,),
            in_specs=[
                pl.BlockSpec((1, K, P), lambda b: (b, 0, 0)),
                pl.BlockSpec((cout, K), lambda b: (0, 0)),
            ],
            out_specs=pl.BlockSpec((1, cout, P), lambda b: (b, 0, 0)),
        ),
        compiler_params=pltpu.CompilerParams(
            dimension_semantics=("parallel",)),   # v7x: 2 TCs split the batch
    )(patches, w_mat)

    # (N, Cout, OH*OW) -> (N, Cout, OH, OW): already NCHW, reshape only.
    return out.reshape(n, cout, oh, ow)


if __name__ == "__main__":
    # Module config: MyConv2d(in_channel=4, out_channel=8, kernel_size=3,
    #                          stride=(1,1), padding=1)
    in_channel, out_channel, ksize, stride, padding = 4, 8, 3, (1, 1), 1

    key = jax.random.PRNGKey(0)
    kx, kw_, kb = jax.random.split(key, 3)

    x = jax.random.normal(kx, (2, in_channel, 16, 16), dtype=jnp.float32)
    # Deterministic parameter init (synthetic; shapes match nn.Conv2d).
    fan_in = in_channel * ksize * ksize
    weight = jax.random.normal(kw_, (out_channel, in_channel, ksize, ksize),
                               dtype=jnp.float32) * (1.0 / fan_in) ** 0.5
    bias = jax.random.normal(kb, (out_channel,), dtype=jnp.float32) * 0.01

    y = my_conv2d(x, weight, bias, stride=stride, padding=padding)
    jax.block_until_ready(y)
    assert y.shape == (2, out_channel, 16, 16)
    assert bool(jnp.all(y >= 0.0))          # ReLU output
    print("KERNEL_OK")
</pallas_src>

<mosaic_0001>
module attributes {stable_mosaic.version = 11 : i64} {
  func.func @_conv_in_relu_kernel(%arg0: i32, %arg1: memref<1x36x256xbf16, #tpu.memory_space<vmem>>, %arg2: memref<8x36xbf16, #tpu.memory_space<vmem>>, %arg3: memref<1x8x256xf32, #tpu.memory_space<vmem>>) attributes {dimension_semantics = [#tpu.dimension_semantics<parallel>], iteration_bounds = array<i64: 2>, scalar_prefetch = 0 : i64, scratch_operands = 0 : i64, tpu.core_type = #tpu.core_type<tc>, window_params = [{transform_indices = @transform_0, window_bounds = array<i64: 1, 36, 256>}, {pipeline_mode = #tpu.pipeline_mode<synchronous>, transform_indices = @transform_1, window_bounds = array<i64: 8, 36>}, {transform_indices = @transform_2, window_bounds = array<i64: 1, 8, 256>}]} {
    %c0 = arith.constant 0 : index
    %c0_0 = arith.constant 0 : index
    %c0_1 = arith.constant 0 : index
    %0 = vector.load %arg1[%c0, %c0_0, %c0_1] : memref<1x36x256xbf16, #tpu.memory_space<vmem>>, vector<1x36x256xbf16>
    %1 = vector.shape_cast %0 : vector<1x36x256xbf16> to vector<36x256xbf16>
    %c0_2 = arith.constant 0 : index
    %c0_3 = arith.constant 0 : index
    %2 = vector.load %arg2[%c0_2, %c0_3] : memref<8x36xbf16, #tpu.memory_space<vmem>>, vector<8x36xbf16>
    %cst = arith.constant dense<0.000000e+00> : vector<8x256xf32>
    %3 = tpu.matmul %2, %1, %cst {dimension_numbers = #tpu.dot_dimension_numbers<[1], [0], [0], [1], [0, 0, 1, 1], [], []>} : vector<8x36xbf16>, vector<36x256xbf16>, vector<8x256xf32> -> vector<8x256xf32>
    %cst_4 = arith.constant dense<0.000000e+00> : vector<8xf32>
    %4 = vector.multi_reduction <add>, %3, %cst_4 [1] : vector<8x256xf32> to vector<8xf32>
    %5 = vector.shape_cast %4 : vector<8xf32> to vector<8x1xf32>
    %cst_5 = arith.constant 3.906250e-03 : f32
    %6 = vector.broadcast %cst_5 : f32 to vector<8x1xf32>
    %7 = arith.mulf %5, %6 : vector<8x1xf32>
    %8 = arith.mulf %3, %3 : vector<8x256xf32>
    %cst_6 = arith.constant dense<0.000000e+00> : vector<8xf32>
    %9 = vector.multi_reduction <add>, %8, %cst_6 [1] : vector<8x256xf32> to vector<8xf32>
    %10 = vector.shape_cast %9 : vector<8xf32> to vector<8x1xf32>
    %cst_7 = arith.constant 3.906250e-03 : f32
    %11 = vector.broadcast %cst_7 : f32 to vector<8x1xf32>
    %12 = arith.mulf %10, %11 : vector<8x1xf32>
    %13 = arith.mulf %7, %7 : vector<8x1xf32>
    %14 = arith.subf %12, %13 : vector<8x1xf32>
    %15 = vector.broadcast %7 : vector<8x1xf32> to vector<8x256xf32>
    %16 = arith.subf %3, %15 : vector<8x256xf32>
    %cst_8 = arith.constant 9.99999974E-6 : f32
    %17 = vector.broadcast %cst_8 : f32 to vector<8x1xf32>
    %18 = arith.addf %14, %17 : vector<8x1xf32>
    %19 = math.rsqrt %18 : vector<8x1xf32>
    %20 = vector.broadcast %19 : vector<8x1xf32> to vector<8x256xf32>
    %21 = arith.mulf %16, %20 : vector<8x256xf32>
    %cst_9 = arith.constant 0.000000e+00 : f32
    %22 = vector.broadcast %cst_9 : f32 to vector<8x256xf32>
    %23 = arith.maximumf %21, %22 : vector<8x256xf32>
    %c0_10 = arith.constant 0 : index
    %c0_11 = arith.constant 0 : index
    %c0_12 = arith.constant 0 : index
    %24 = vector.load %arg3[%c0_10, %c0_11, %c0_12] : memref<1x8x256xf32, #tpu.memory_space<vmem>>, vector<1x8x256xf32>
    %25 = vector.shape_cast %24 : vector<1x8x256xf32> to vector<8x256xf32>
    %26 = vector.shape_cast %23 : vector<8x256xf32> to vector<1x8x256xf32>
    tpu.vector_store %arg3[%c0_10, %c0_11, %c0_12], %26 {strides = array<i32>} : memref<1x8x256xf32, #tpu.memory_space<vmem>>, vector<1x8x256xf32>,
    return
  }
  func.func @transform_0(%arg0: i32) -> (i32, i32, i32) {
    %c0_i32 = arith.constant 0 : i32
    %c0_i32_0 = arith.constant 0 : i32
    %c0_i32_1 = arith.constant 0 : i32
    return %arg0, %c0_i32, %c0_i32_0 : i32, i32, i32
  }
  func.func @transform_1(%arg0: i32) -> (i32, i32) {
    %c0_i32 = arith.constant 0 : i32
    %c0_i32_0 = arith.constant 0 : i32
    %c0_i32_1 = arith.constant 0 : i32
    return %c0_i32, %c0_i32_0 : i32, i32
  }
  func.func @transform_2(%arg0: i32) -> (i32, i32, i32) {
    %c0_i32 = arith.constant 0 : i32
    %c0_i32_0 = arith.constant 0 : i32
    %c0_i32_1 = arith.constant 0 : i32
    return %arg0, %c0_i32, %c0_i32_0 : i32, i32, i32
  }
}

</mosaic_0001>

<llo_original>
// kernel: tpu_custom_call.1
$region0: #{tpu_custom_call.1}
  #allocation0 [shape = 'u32[]', space=smem, size = 0x4, offset = 0x4, fixed_abs, tag = 'smem constant byte address 0x4 - core index']
  #allocation1 [shape = 'u32[144,128]{1,0:T(1,128)}', space=vmem, size = 0x12000, scoped, tag = 'internal scratch']
  %s0 = inlined_call_operand.vmem [shape: bf16[2,36,256], index: 0, kind: input, shape index: {}]
  %s1 = inlined_call_operand.vmem [shape: bf16[8,36], index: 1, kind: input, shape index: {}]
  %s2 = inlined_call_operand.hbm [shape: f32[2,8,256], index: 2, kind: output, shape index: {}]
  %s3 = sld [smem:[#allocation0]]
  $region41: #{tpu_custom_call.1} parent=0
    _
  %s5 = ssub.s32 1, %s3
  %s6 = scalar_select 0, %s5, %s3
  $region1: #{tpu_custom_call.1} parent=0
    #allocation2 [shape = 'u8[16384]{0}', space=vmem, size = 0x4000, scoped, tag = 'output window, operand 0']
    #allocation3 [shape = 's32[2]{0}', space=sflag, size = 0x8, scoped, tag = 'scoped memory for tpu_custom_call.1']
    %7 = vsyncpa [#allocation3], 0
    %s8 = scalar_lea.sflag [#allocation3], 1
    %9 = vsyncpa %s8, 0
    loop: start=0, step=1, limit=4
    $region2: #{tpu_custom_call.1} parent=1 // loop_pre_header
      _
    $region3: #{tpu_custom_call.1} parent=1 // loop_header
      %s11 = sphi 0, %s15
      %p12 = scmp.ge.s32.totalorder %s11, 4
      %s21 = sphi 0, %s23
      %s24 = sphi 0, %s21
      %s25 = sphi 0, %s24
      %s41 = sphi 0, %s25
      %s45 = sphi 0, %s45
      %s47 = sphi 0, %s45
      %s48 = sphi 0, %s47
      %s62 = sphi 0, %s48
      %s68 = sphi 0, %s70
      %s71 = sphi 0, %s68
      %s72 = sphi 0, %s71
      %s88 = sphi 0, %s72
    $region4: #{tpu_custom_call.1} parent=1 // loop_header_branch
      %14 = sbr.rel (%p12) target = $region8
    $region5: #{tpu_custom_call.1} parent=1 // loop_body
      %s16 = ssub.s32 %s11, 1
      %s17 = ssub.s32 %s11, 2
      %s18 = sadd.s32 %s11, 1
      %s19 = ssub.s32 %s11, %s18
      %p20 = scmp.eq.s32.totalorder %s19, 0
      %s22 = sadd.s32 %s21, 1
      %s23 = scalar_select %p20, %s21, %s22
      %p26 = pneg %p20
      %p27 = scmp.eq.s32.totalorder %s11, 1
      %p28 = por %p26, %p27
      %p29 = scmp.ne.s32.totalorder %s21, %s24
      %p30 = scmp.eq.s32.totalorder %s11, 0
      %p31 = por %p29, %p30
      %p32 = scmp.ne.s32.totalorder %s21, %s24
      %p33 = scmp.eq.s32.totalorder %s16, 1
      %p34 = por %p32, %p33
      %p35 = scmp.ne.s32.totalorder %s24, %s25
      %p36 = scmp.eq.s32.totalorder %s16, 0
      %p37 = por %p35, %p36
      %p38 = scmp.ne.s32.totalorder %s24, %s25
      %p39 = scmp.eq.s32.totalorder %s17, 1
      %p40 = por %p38, %p39
      %p42 = scmp.ne.s32.totalorder %s25, %s41
      %p43 = scmp.eq.s32.totalorder %s17, 0
      %p44 = por %p42, %p43
      %s46 = sadd.s32 %s45, 1
      %p49 = scmp.eq.s32.totalorder %s11, 1
      %p50 = scmp.ne.s32.totalorder %s45, %s47
      %p51 = scmp.eq.s32.totalorder %s11, 0
      %p52 = por %p50, %p51
      %p53 = scmp.ne.s32.totalorder %s45, %s47
      %p54 = scmp.eq.s32.totalorder %s16, 1
      %p55 = por %p53, %p54
      %p56 = scmp.ne.s32.totalorder %s47, %s48
      %p57 = scmp.eq.s32.totalorder %s16, 0
      %p58 = por %p56, %p57
      %p59 = scmp.ne.s32.totalorder %s47, %s48
      %p60 = scmp.eq.s32.totalorder %s17, 1
      %p61 = por %p59, %p60
      %p63 = scmp.ne.s32.totalorder %s48, %s62
      %p64 = scmp.eq.s32.totalorder %s17, 0
      %p65 = por %p63, %p64
      %s66 = ssub.s32 %s11, %s18
      %p67 = scmp.eq.s32.totalorder %s66, 0
      %s69 = sadd.s32 %s68, 1
      %s70 = scalar_select %p67, %s68, %s69
      %p73 = pneg %p67
      %p74 = scmp.eq.s32.totalorder %s11, 1
      %p75 = por %p73, %p74
      %p76 = scmp.ne.s32.totalorder %s68, %s71
      %p77 = scmp.eq.s32.totalorder %s11, 0
      %p78 = por %p76, %p77
      %p79 = scmp.ne.s32.totalorder %s68, %s71
      %p80 = scmp.eq.s32.totalorder %s16, 1
      %p81 = por %p79, %p80
      %p82 = scmp.ne.s32.totalorder %s71, %s72
      %p83 = scmp.eq.s32.totalorder %s16, 0
      %p84 = por %p82, %p83
      %p85 = scmp.ne.s32.totalorder %s71, %s72
      %p86 = scmp.eq.s32.totalorder %s17, 1
      %p87 = por %p85, %p86
      %p89 = scmp.ne.s32.totalorder %s72, %s88
      %p90 = scmp.eq.s32.totalorder %s17, 0
      %p91 = por %p89, %p90
      %p92 = scmp.le.s32.totalorder 1, %s11
      %p93 = scmp.lt.s32.totalorder %s11, 3
      %p94 = pnand %p92, %p93
      %p95 = pneg %p94
      // Predicated region
      $region9: #{tpu_custom_call.1} parent=5 // pred_check
        _
      $region10: #{tpu_custom_call.1} parent=5 // pred_check_branch
        %97 = sbr.rel (%p94) target = $region12
      $region11: #{tpu_custom_call.1} parent=5 // pred_region
        %s98 = ssub.s32 %s11, 1
        // Predicated region
        $region13: #{tpu_custom_call.1} parent=11 // pred_check
          %p99 = pneg %p58
        $region14: #{tpu_custom_call.1} parent=11 // pred_check_branch
          %101 = sbr.rel (%p99) target = $region16
        $region15: #{tpu_custom_call.1} parent=11 // pred_region
          _
        $region16: #{tpu_custom_call.1} parent=11 // pred_fallthru
          _
      $region12: #{tpu_custom_call.1} parent=5 // pred_fallthru
        _
      %p102 = scmp.lt.s32.totalorder %s11, 2
      // Predicated region
      $region17: #{tpu_custom_call.1} parent=5 // pred_check
        %p103 = pneg %p102
      $region18: #{tpu_custom_call.1} parent=5 // pred_check_branch
        %105 = sbr.rel (%p103) target = $region20
      $region19: #{tpu_custom_call.1} parent=5 // pred_region
        // Predicated region
        $region21: #{tpu_custom_call.1} parent=19 // pred_check
          %p106 = pneg %p31
        $region22: #{tpu_custom_call.1} parent=19 // pred_check_branch
          %108 = sbr.rel (%p106) target = $region24
        $region23: #{tpu_custom_call.1} parent=19 // pred_region
          %p109 = scmp.lt.s32.totalorder %s11, 1
          %s110 = scalar_select %p109, %s11, 1
          %s111 = smul.addr %s110, 10
          %s112 = smul.addr %s111, 4
          %s113 = scalar_lea.vmem %s0, %s112
        $region24: #{tpu_custom_call.1} parent=19 // pred_fallthru
          _
      $region20: #{tpu_custom_call.1} parent=5 // pred_fallthru
        _
      %p114 = scmp.le.s32.totalorder 1, %s11
      %p115 = scmp.lt.s32.totalorder %s11, 3
      %p116 = pnand %p114, %p115
      %p117 = pneg %p116
      // Predicated region
      $region25: #{tpu_custom_call.1} parent=5 // pred_check
        _
      $region26: #{tpu_custom_call.1} parent=5 // pred_check_branch
        %119 = sbr.rel (%p116) target = $region28
      $region27: #{tpu_custom_call.1} parent=5 // pred_region
        %s120 = ssub.s32 %s11, 1
        %p121 = scmp.lt.s32.totalorder %s16, 1
        %s122 = scalar_select %p121, %s16, 1
        %s123 = smul.addr %s122, 10
        %s124 = smul.addr %s123, 4
        %s125 = scalar_lea.vmem %s0, %s124
        %p126 = pneg %p37
        %p127 = pneg %p34
        %p128 = pneg %p58
        %p129 = pneg %p55
        %p130 = pneg %p84
        %p131 = pneg %p81
        %s132 = sand.u32 %s71, 1
        %s133 = scalar_lea.sflag [#allocation3], %s132
        %s134 = sand.u32 %s71, 1
        %s135 = smul.addr %s134, 16
        %s136 = scalar_lea.vmem [#allocation2], %s135
        %p137 = scmp.lt.s32.totalorder %s16, 1
        %s138 = scalar_select %p137, %s16, 1
        %s139 = smul.addr %s138, 10
        %s140 = smul.addr %s139, 4
        %s141 = scalar_lea.vmem %s0, %s140
        %v143 = vld [vmem:[%s141] sm:$0xff]
        %v144 = vld [vmem:[%s141 + $0x8] sm:$0xff]
        %v145 = vld [vmem:[%s141 + $0x10] sm:$0xff]
        %v146 = vld [vmem:[%s141 + $0x18] sm:$0xff]
        %v147 = vld [vmem:[%s141 + $0x20] sm:$0x33]
        %v148 = vld [vmem:[%s1] sm:$0xf]
        %v154 = vunpack.c.l.b16 %v143
        %v155 = vunpack.c.h.b16 %v143
        %v156 = vunpack.c.l.b16 %v144
        %v157 = vunpack.c.h.b16 %v144
        %v158 = vunpack.c.l.b16 %v145
        %v159 = vunpack.c.h.b16 %v145
        %v160 = vunpack.c.l.b16 %v146
        %v161 = vunpack.c.h.b16 %v146
        %v162 = vunpack.c.l.b16 %v147
        %v163 = vunpack.c.h.b16 %v147
        %v164 = vpack.c.b16 %v156, %v154
        %v165 = vpack.c.b16 %v157, %v155
        %v166 = vpack.c.b16 %v160, %v158
        %v167 = vpack.c.b16 %v161, %v159
        %v168 = vpack.c.b16 %v162, %v162
        %v169 = vpack.c.b16 %v163, %v163
        %vm174 = vcmask 293888
        %v176 = vsel %vm174, %v148, 0
        %vm178 = vcmask 1041408
        %v180 = vsel %vm178, %v168, 0
        %v183 = vsel %vm178, %v169, 0
        %185 = vmatprep.subr.bf16.mxu0 %v165
        %186 = vmatpush1.bf16.msra.mxu0 %v164
        %187 = vmatprep.subr.bf16.mxu0 %v167
        %188 = vmatpush1.bf16.msra.mxu0 %v166
        %189 = vmatprep.subr.bf16.mxu0 %v183
        %190 = vmatpush1.bf16.msra.mxu0 %v180
        %191 = vmatprep.subr.bf16.mxu0 0
        %192 = vmatpush1.bf16.msra.mxu0 0
        %193 = vmatprep.subr.bf16.mxu0 0
        %194 = vmatpush1.bf16.msra.mxu0 0
        %195 = vmatprep.subr.bf16.mxu0 0
        %196 = vmatpush1.bf16.msra.mxu0 0
        %197 = vmatprep.subr.bf16.mxu0 0
        %198 = vmatpush1.bf16.msra.mxu0 0
        %199 = vmatprep.subr.bf16.mxu0 0
        %200 = vmatpush1.bf16.msra.mxu0 0
        %201 = vmatprep.subr.bf16.mxu0 0
        %202 = vmatpush1.bf16.msra.mxu0 0
        %203 = vmatprep.subr.bf16.mxu0 0
        %204 = vmatpush1.bf16.msra.mxu0 0
        %205 = vmatprep.subr.bf16.mxu0 0
        %206 = vmatpush1.bf16.msra.mxu0 0
        %207 = vmatprep.subr.bf16.mxu0 0
        %208 = vmatpush1.bf16.msra.mxu0 0
        %209 = vmatprep.subr.bf16.mxu0 0
        %210 = vmatpush1.bf16.msra.mxu0 0
        %211 = vmatprep.subr.bf16.mxu0 0
        %212 = vmatpush1.bf16.msra.mxu0 0
        %213 = vmatprep.subr.bf16.mxu0 0
        %214 = vmatpush1.bf16.msra.mxu0 0
        %215 = vmatprep.subr.bf16.mxu0 0
        %216 = vmatpush1.bf16.msra.mxu0 0
        %217 = vmatprep.mubr.bf16.mxu0 0
        %218 = vmatmul.mubr.bf16.gmra.mrb[0].mxu0 %v176
        %v219 = vpop.f32.mrb[0].mxu0
        %v220 = vadd.f32 0.0, %v219
        %v221 = vpop.f32.mrb[0].mxu0
        %v222 = vadd.f32 0.0, %v221
        %v223 = vpop.f32.mrb[0].mxu0
        %v224 = vpop.f32.mrb[0].mxu0
        %225 = vdwg.mxu0
        %v226 = vadd.f32 %v220, %v222
        %227 = vadd.xlane.f32.xlu0 %v226
        %v228 = vpop.xlane.xlu0 %227
        %v229 = vmul.f32 %v228, 0.00390625
        %v230 = vmul.f32 %v220, %v220
        %v231 = vmul.f32 %v222, %v222
        %v232 = vadd.f32 %v230, %v231
        %233 = vadd.xlane.f32.xlu0 %v232
        %v234 = vpop.xlane.xlu0 %233
        %v235 = vmul.f32 %v234, 0.00390625
        %v236 = vmul.f32 %v229, %v229
        %v237 = vsub.f32 %v235, %v236
        %v238 = vsub.f32 %v220, %v229
        %v239 = vsub.f32 %v222, %v229
        %v240 = vadd.f32 %v237, 1e-05
        %v241 = vrsqrt.pop %v240
        %v242 = vmul.f32 %v238, %v241
        %v243 = vmul.f32 %v239, %v241
        %v244 = vmax.f32 %v242, 0.0
        %v245 = vmax.f32 %v243, 0.0
        %246 = vst [vmem:[%s136] sm:$0xff] %v244
        %247 = vst [vmem:[%s136 + $0x8] sm:$0xff] %v245
        %s248 = sand.u32 %s71, 1
        %s249 = scalar_lea.sflag [#allocation3], %s248
        %s250 = sand.u32 %s71, 1
        %s251 = smul.addr %s250, 16
        %s252 = scalar_lea.vmem [#allocation2], %s251
        // Predicated region
        $region29: #{tpu_custom_call.1} parent=27 // pred_check
          %p253 = pneg %p81
        $region30: #{tpu_custom_call.1} parent=27 // pred_check_branch
          %255 = sbr.rel (%p253) target = $region32
        $region31: #{tpu_custom_call.1} parent=27 // pred_region
          %s257 = ssub.s32 256, 256
          %258 = vsyncadd %s249, %s257
          %s259 = smul.addr %s16, 2
          %s260 = smul.addr %s259, 128
          %s261 = scalar_lea.hbm %s2, %s260
          %s263 = sshll.u32 %s252, 4
          %s264 = int_to_ptr.vmem [resolvable:$true] %s263
          %266 = dma.vmem_to_hbm [thread:$0]  %s264, 256, %s261, %s249
        $region32: #{tpu_custom_call.1} parent=27 // pred_fallthru
          _
      $region28: #{tpu_custom_call.1} parent=5 // pred_fallthru
        _
      %p267 = scmp.le.s32.totalorder 2, %s11
      // Predicated region
      $region33: #{tpu_custom_call.1} parent=5 // pred_check
        %p268 = pneg %p267
      $region34: #{tpu_custom_call.1} parent=5 // pred_check_branch
        %270 = sbr.rel (%p268) target = $region36
      $region35: #{tpu_custom_call.1} parent=5 // pred_region
        %s271 = ssub.s32 %s11, 2
        // Predicated region
        $region37: #{tpu_custom_call.1} parent=35 // pred_check
          %p272 = pneg %p87
        $region38: #{tpu_custom_call.1} parent=35 // pred_check_branch
          %274 = sbr.rel (%p272) target = $region40
        $region39: #{tpu_custom_call.1} parent=35 // pred_region
          %s275 = sand.u32 %s72, 1
          %s276 = scalar_lea.sflag [#allocation3], %s275
          %s277 = sand.u32 %s72, 1
          %s278 = smul.addr %s277, 16
          %s279 = scalar_lea.vmem [#allocation2], %s278
          %280 = dma.done %s276, 256
        $region40: #{tpu_custom_call.1} parent=35 // pred_fallthru
          _
      $region36: #{tpu_custom_call.1} parent=5 // pred_fallthru
        _
    $region6: #{tpu_custom_call.1} parent=1 // loop_footer
      %s15 = sadd.s32 1, %s11
    $region7: #{tpu_custom_call.1} parent=1 // loop_footer_branch
      %10 = sbr.rel target = $region3
    $region8: #{tpu_custom_call.1} parent=1 // loop_exit
      _
    %281 = vsyncpa [#allocation3], 1
    %s282 = scalar_lea.sflag [#allocation3], 1
    %283 = vsyncpa %s282, 1

</llo_original>
